<compile_context>
chip_gen: v7x
topology: tpu7x:2x2x1
jax: 0.10.0
libtpu: 0.0.40
codegen_flags: <defaults>
</compile_context>

<pallas_src>
import math
import functools

import jax
import jax.numpy as jnp
from jax.experimental import pallas as pl
from jax.experimental.pallas import tpu as pltpu


_SQRT_HALF = 1.0 / math.sqrt(2.0)


def _gelu_exact(x):
    # nn.GELU() default: exact erf formulation (EUP/VPU work, hidden under MXU time).
    return 0.5 * x * (1.0 + jax.lax.erf(x * _SQRT_HALF))


# ----------------------------- kernels ---------------------------------------


def mlp_kernel_resident(x_ref, w1_ref, b1_ref, w2_ref, b2_ref, o_ref):
    """Weights fully VMEM-resident: one pass, no accumulator scratch."""
    h = (
        jnp.dot(x_ref[...], w1_ref[...], preferred_element_type=jnp.float32)
        + b1_ref[...].astype(jnp.float32)
    )
    g = _gelu_exact(h)
    out = (
        jnp.dot(g.astype(w2_ref.dtype), w2_ref[...], preferred_element_type=jnp.float32)
        + b2_ref[...].astype(jnp.float32)
    )
    o_ref[...] = out.astype(o_ref.dtype)


def mlp_kernel_ktiled(x_ref, w1_ref, b1_ref, w2_ref, b2_ref, o_ref, acc_ref):
    """Hidden dim streamed in chunks:  acc += GELU(x @ W1[:,k] + b1[k]) @ W2[k,:]."""
    k = pl.program_id(1)
    tk = w1_ref.shape[1]  # static chunk width

    @pl.when(k == 0)
    def _init():
        acc_ref[...] = jnp.broadcast_to(
            b2_ref[...].astype(jnp.float32), acc_ref.shape
        )

    # b1 is one constant-index block; slice the chunk in-kernel (no per-step DMA).
    off = pl.multiple_of(k * tk, 128)
    b1_chunk = b1_ref[:, pl.ds(off, tk)].astype(jnp.float32)

    h = jnp.dot(x_ref[...], w1_ref[...], preferred_element_type=jnp.float32) + b1_chunk
    g = _gelu_exact(h)
    acc_ref[...] += jnp.dot(
        g.astype(w2_ref.dtype), w2_ref[...], preferred_element_type=jnp.float32
    )

    @pl.when(k == pl.num_programs(1) - 1)
    def _finalize():
        o_ref[...] = acc_ref[...].astype(o_ref.dtype)


# ----------------------------- config helpers ---------------------------------


def _ceil_to(v, m):
    return ((v + m - 1) // m) * m


_VMEM_BUDGET = 44 * 1024 * 1024  # conservative: fits v7x (64 MiB physical) w/ headroom


def _vmem_cap_bytes():
    try:
        return int(pltpu.get_tpu_info().vmem_capacity_bytes)
    except Exception:
        return 64 * 1024 * 1024  # most restrictive generation (v7x)


def _largest_tile(total, unit, cap):
    """Largest multiple of `unit` that divides `total` and is <= cap."""
    best = unit
    t = unit
    lim = min(total, cap)
    while t <= lim:
        if total % t == 0:
            best = t
        t += unit
    return best


def _resident_vmem(tm, cin_p, dh_p, cout_p, mm_b, out_b):
    return (
        2 * tm * cin_p * mm_b                    # x tiles (double-buffered)
        + 2 * (cin_p * dh_p + dh_p * cout_p) * mm_b  # W1 + W2 buffers
        + 2 * (dh_p + cout_p) * 4                # biases (f32)
        + 2 * tm * cout_p * out_b                # out tiles
        + 2 * tm * dh_p * 4                      # f32 hidden intermediates (h, g)
    )


def _ktiled_vmem(tm, cin_p, tk, cout_p, dh_p, mm_b, out_b):
    return (
        2 * tm * cin_p * mm_b
        + 2 * (cin_p * tk + tk * cout_p) * mm_b
        + 2 * (dh_p + cout_p) * 4
        + 2 * tm * cout_p * out_b
        + tm * cout_p * 4                        # f32 accumulator scratch
        + 2 * tm * tk * 4                        # f32 hidden intermediates
    )


def _choose_config(M, cin_p, dh_p, cout_p, mm_b, out_b):
    """Return (tm, tk, resident, vmem_estimate)."""
    row_cap = _ceil_to(M, 8)

    # Preferred: weights fully resident (streamed from HBM exactly once).
    for tm_c in (512, 256, 128):
        tm = min(tm_c, row_cap)
        est = _resident_vmem(tm, cin_p, dh_p, cout_p, mm_b, out_b)
        if est <= _VMEM_BUDGET:
            return tm, dh_p, True, est

    # Fallback: stream hidden dim in chunks; prefer large row tiles (less weight
    # re-streaming), then large chunks.
    for tm_c in (512, 256, 128):
        tm = min(tm_c, row_cap)
        for tk_cap in (1024, 512, 256, 128):
            tk = _largest_tile(dh_p, 128, tk_cap)
            est = _ktiled_vmem(tm, cin_p, tk, cout_p, dh_p, mm_b, out_b)
            if est <= _VMEM_BUDGET:
                return tm, tk, False, est

    tm = min(128, row_cap)
    tk = 128
    return tm, tk, False, _ktiled_vmem(tm, cin_p, tk, cout_p, dh_p, mm_b, out_b)


# ----------------------------- wrappers ---------------------------------------


def prepare_mlp_params(fc1_w, fc1_b, fc2_w, fc2_b, matmul_dtype=jnp.bfloat16):
    """One-time weight prep (hoisted out of the hot path).

    Torch layout in: fc1_w (Dh, Cin), fc1_b (Dh,), fc2_w (Cout, Dh), fc2_b (Cout,).
    Returns padded/transposed/cast arrays plus the original out_features.
    """
    Dh, Cin = fc1_w.shape
    Cout, Dh2 = fc2_w.shape
    assert Dh2 == Dh

    Cin_pad = _ceil_to(Cin, 128)
    Dh_pad = _ceil_to(Dh, 128)
    Cout_pad = _ceil_to(Cout, 128)

    w1 = jnp.pad(jnp.transpose(fc1_w), ((0, Cin_pad - Cin), (0, Dh_pad - Dh)))
    w2 = jnp.pad(jnp.transpose(fc2_w), ((0, Dh_pad - Dh), (0, Cout_pad - Cout)))
    w1 = w1.astype(matmul_dtype)
    w2 = w2.astype(matmul_dtype)
    # Biases stay f32 (added in f32 inside the kernel).
    b1 = jnp.pad(fc1_b.astype(jnp.float32), (0, Dh_pad - Dh)).reshape(1, Dh_pad)
    b2 = jnp.pad(fc2_b.astype(jnp.float32), (0, Cout_pad - Cout)).reshape(1, Cout_pad)
    return w1, b1, w2, b2, Cout


@functools.partial(jax.jit, static_argnames=("out_features",))
def mlp_forward(x, w1, b1, w2, b2, *, out_features):
    """x: (..., Cin).  w1: (Cin_pad, Dh_pad), b1: (1, Dh_pad), w2: (Dh_pad, Cout_pad),
    b2: (1, Cout_pad) — as produced by prepare_mlp_params."""
    orig_shape = x.shape
    out_dtype = x.dtype
    Cin = orig_shape[-1]
    Cin_pad, Dh_pad = w1.shape
    Cout_pad = w2.shape[1]
    mm_dtype = w1.dtype

    x2d = x.reshape(-1, Cin)
    M = x2d.shape[0]

    mm_b = jnp.dtype(mm_dtype).itemsize
    out_b = jnp.dtype(out_dtype).itemsize
    tm, tk, resident, est = _choose_config(M, Cin_pad, Dh_pad, Cout_pad, mm_b, out_b)

    M_pad = _ceil_to(M, tm)

    # Hot-path activation prep only (zero-padding is mathematically exact).
    x_p = jnp.pad(x2d, ((0, M_pad - M), (0, Cin_pad - Cin))).astype(mm_dtype)

    # VMEM limit: generous where physical VMEM allows, budgeted under v7x's 64 MiB.
    cap = _vmem_cap_bytes()
    vmem_limit = int(min(cap - (4 << 20), max(2 * est, 64 << 20)))

    if resident:
        grid = (M_pad // tm,)
        in_specs = [
            pl.BlockSpec((tm, Cin_pad), lambda i: (i, 0)),        # x rows
            pl.BlockSpec((Cin_pad, Dh_pad), lambda i: (0, 0)),    # W1 (resident)
            pl.BlockSpec((1, Dh_pad), lambda i: (0, 0)),          # b1 (resident)
            pl.BlockSpec((Dh_pad, Cout_pad), lambda i: (0, 0)),   # W2 (resident)
            pl.BlockSpec((1, Cout_pad), lambda i: (0, 0)),        # b2 (resident)
        ]
        out_specs = pl.BlockSpec((tm, Cout_pad), lambda i: (i, 0))
        kernel = mlp_kernel_resident
        scratch_shapes = ()
        dims = ("parallel",)
    else:
        grid = (M_pad // tm, Dh_pad // tk)
        in_specs = [
            pl.BlockSpec((tm, Cin_pad), lambda i, k: (i, 0)),     # x rows
            pl.BlockSpec((Cin_pad, tk), lambda i, k: (0, k)),     # W1 hidden chunk
            pl.BlockSpec((1, Dh_pad), lambda i, k: (0, 0)),       # b1 (constant block)
            pl.BlockSpec((tk, Cout_pad), lambda i, k: (k, 0)),    # W2 hidden chunk
            pl.BlockSpec((1, Cout_pad), lambda i, k: (0, 0)),     # b2
        ]
        out_specs = pl.BlockSpec((tm, Cout_pad), lambda i, k: (i, 0))
        kernel = mlp_kernel_ktiled
        scratch_shapes = (pltpu.VMEM((tm, Cout_pad), jnp.float32),)
        dims = ("parallel", "arbitrary")

    out = pl.pallas_call(
        kernel,
        grid=grid,
        in_specs=in_specs,
        out_specs=out_specs,
        out_shape=jax.ShapeDtypeStruct((M_pad, Cout_pad), out_dtype),
        scratch_shapes=scratch_shapes,
        compiler_params=pltpu.CompilerParams(
            dimension_semantics=dims,
            vmem_limit_bytes=vmem_limit,
        ),
    )(x_p, w1, b1, w2, b2)

    # strip padding, restore leading dims
    return out[:M, :out_features].reshape(*orig_shape[:-1], out_features)


# TODO(synk): nn.Dropout(drop=0.0) in eval mode is an identity -> intentionally omitted.


# ----------------------------- main ------------------------------------------

if __name__ == "__main__":
    # Small-but-consistent shapes (ViT-style token MLP):
    # batch=2, seq=8, in_features=32, hidden=128 (mlp_ratio=4), out_features=32.
    B, N, C = 2, 8, 32
    DH = 4 * C

    key = jax.random.PRNGKey(0)
    kx, k1, k2, k3, k4 = jax.random.split(key, 5)

    x = jax.random.normal(kx, (B, N, C), jnp.float32)

    # torch nn.Linear layout: weight (out, in), bias (out,)
    fc1_w = 0.02 * jax.random.normal(k1, (DH, C), jnp.float32)
    fc1_b = 0.02 * jax.random.normal(k2, (DH,), jnp.float32)
    fc2_w = 0.02 * jax.random.normal(k3, (C, DH), jnp.float32)
    fc2_b = 0.02 * jax.random.normal(k4, (C,), jnp.float32)

    # One-time weight prep (pad + transpose + bf16 cast), outside the hot path.
    w1, b1, w2, b2, cout = prepare_mlp_params(fc1_w, fc1_b, fc2_w, fc2_b)

    out = mlp_forward(x, w1, b1, w2, b2, out_features=cout)
    out = jax.block_until_ready(out)

    # Reference with the SAME bf16 operand rounding (f32 accumulation), matching the
    # kernel's numerics; plus a loose sanity check against the pure-f32 reference.
    w1_t = jnp.transpose(fc1_w)
    w2_t = jnp.transpose(fc2_w)

    def ref_bf16(xx):
        xb = xx.astype(jnp.bfloat16).astype(jnp.float32)
        w1b = w1_t.astype(jnp.bfloat16).astype(jnp.float32)
        w2b = w2_t.astype(jnp.bfloat16).astype(jnp.float32)
        h = xb @ w1b + fc1_b
        g = 0.5 * h * (1.0 + jax.lax.erf(h / math.sqrt(2.0)))
        gb = g.astype(jnp.bfloat16).astype(jnp.float32)
        return gb @ w2b + fc2_b

    def ref_f32(xx):
        h = xx @ w1_t + fc1_b
        g = 0.5 * h * (1.0 + jax.lax.erf(h / math.sqrt(2.0)))
        return g @ w2_t + fc2_b

    ref = ref_bf16(x)
    ref32 = ref_f32(x)

    assert out.shape == (B, N, C)
    assert bool(jnp.all(jnp.isfinite(out)))
    assert bool(jnp.allclose(out, ref, atol=1e-4, rtol=1e-4)), (
        float(jnp.max(jnp.abs(out - ref)))
    )
    assert bool(jnp.allclose(out, ref32, atol=3e-2, rtol=3e-2)), (
        float(jnp.max(jnp.abs(out - ref32)))
    )
    print("KERNEL_OK")
</pallas_src>

<mosaic_0001>
module attributes {stable_mosaic.version = 11 : i64} {
  func.func @mlp_kernel_resident(%arg0: i32, %arg1: memref<16x128xbf16, #tpu.memory_space<vmem>>, %arg2: memref<128x128xbf16, #tpu.memory_space<vmem>>, %arg3: memref<1x128xf32, #tpu.memory_space<vmem>>, %arg4: memref<128x128xbf16, #tpu.memory_space<vmem>>, %arg5: memref<1x128xf32, #tpu.memory_space<vmem>>, %arg6: memref<16x128xf32, #tpu.memory_space<vmem>>) attributes {dimension_semantics = [#tpu.dimension_semantics<parallel>], iteration_bounds = array<i64: 1>, scalar_prefetch = 0 : i64, scratch_operands = 0 : i64, tpu.core_type = #tpu.core_type<tc>, window_params = [{transform_indices = @transform_0, window_bounds = array<i64: 16, 128>}, {pipeline_mode = #tpu.pipeline_mode<synchronous>, transform_indices = @transform_1, window_bounds = array<i64: 128, 128>}, {pipeline_mode = #tpu.pipeline_mode<synchronous>, transform_indices = @transform_2, window_bounds = array<i64: 1, 128>}, {pipeline_mode = #tpu.pipeline_mode<synchronous>, transform_indices = @transform_3, window_bounds = array<i64: 128, 128>}, {pipeline_mode = #tpu.pipeline_mode<synchronous>, transform_indices = @transform_4, window_bounds = array<i64: 1, 128>}, {transform_indices = @transform_5, window_bounds = array<i64: 16, 128>}]} {
    %c0 = arith.constant 0 : index
    %c0_0 = arith.constant 0 : index
    %0 = vector.load %arg1[%c0, %c0_0] : memref<16x128xbf16, #tpu.memory_space<vmem>>, vector<16x128xbf16>
    %c0_1 = arith.constant 0 : index
    %c0_2 = arith.constant 0 : index
    %1 = vector.load %arg2[%c0_1, %c0_2] : memref<128x128xbf16, #tpu.memory_space<vmem>>, vector<128x128xbf16>
    %cst = arith.constant dense<0.000000e+00> : vector<16x128xf32>
    %2 = tpu.matmul %0, %1, %cst {dimension_numbers = #tpu.dot_dimension_numbers<[1], [0], [0], [1], [0, 0, 1, 1], [], []>} : vector<16x128xbf16>, vector<128x128xbf16>, vector<16x128xf32> -> vector<16x128xf32>
    %c0_3 = arith.constant 0 : index
    %c0_4 = arith.constant 0 : index
    %3 = vector.load %arg3[%c0_3, %c0_4] : memref<1x128xf32, #tpu.memory_space<vmem>>, vector<1x128xf32>
    %4 = vector.broadcast %3 : vector<1x128xf32> to vector<16x128xf32>
    %5 = arith.addf %2, %4 : vector<16x128xf32>
    %cst_5 = arith.constant 5.000000e-01 : f32
    %6 = vector.broadcast %cst_5 : f32 to vector<16x128xf32>
    %7 = arith.mulf %6, %5 : vector<16x128xf32>
    %cst_6 = arith.constant 0.707106769 : f32
    %8 = vector.broadcast %cst_6 : f32 to vector<16x128xf32>
    %9 = arith.mulf %5, %8 : vector<16x128xf32>
    %10 = math.erf %9 : vector<16x128xf32>
    %cst_7 = arith.constant 1.000000e+00 : f32
    %11 = vector.broadcast %cst_7 : f32 to vector<16x128xf32>
    %12 = arith.addf %11, %10 : vector<16x128xf32>
    %13 = arith.mulf %7, %12 : vector<16x128xf32>
    %14 = arith.truncf %13 : vector<16x128xf32> to vector<16x128xbf16>
    %c0_8 = arith.constant 0 : index
    %c0_9 = arith.constant 0 : index
    %15 = vector.load %arg4[%c0_8, %c0_9] : memref<128x128xbf16, #tpu.memory_space<vmem>>, vector<128x128xbf16>
    %cst_10 = arith.constant dense<0.000000e+00> : vector<16x128xf32>
    %16 = tpu.matmul %14, %15, %cst_10 {dimension_numbers = #tpu.dot_dimension_numbers<[1], [0], [0], [1], [0, 0, 1, 1], [], []>} : vector<16x128xbf16>, vector<128x128xbf16>, vector<16x128xf32> -> vector<16x128xf32>
    %c0_11 = arith.constant 0 : index
    %c0_12 = arith.constant 0 : index
    %17 = vector.load %arg5[%c0_11, %c0_12] : memref<1x128xf32, #tpu.memory_space<vmem>>, vector<1x128xf32>
    %18 = vector.broadcast %17 : vector<1x128xf32> to vector<16x128xf32>
    %19 = arith.addf %16, %18 : vector<16x128xf32>
    %c0_13 = arith.constant 0 : index
    %c0_14 = arith.constant 0 : index
    %20 = vector.load %arg6[%c0_13, %c0_14] : memref<16x128xf32, #tpu.memory_space<vmem>>, vector<16x128xf32>
    tpu.vector_store %arg6[%c0_13, %c0_14], %19 {strides = array<i32>} : memref<16x128xf32, #tpu.memory_space<vmem>>, vector<16x128xf32>,
    return
  }
  func.func @transform_0(%arg0: i32) -> (i32, i32) {
    %c0_i32 = arith.constant 0 : i32
    %c0_i32_0 = arith.constant 0 : i32
    return %arg0, %c0_i32 : i32, i32
  }
  func.func @transform_1(%arg0: i32) -> (i32, i32) {
    %c0_i32 = arith.constant 0 : i32
    %c0_i32_0 = arith.constant 0 : i32
    %c0_i32_1 = arith.constant 0 : i32
    return %c0_i32, %c0_i32_0 : i32, i32
  }
  func.func @transform_2(%arg0: i32) -> (i32, i32) {
    %c0_i32 = arith.constant 0 : i32
    %c0_i32_0 = arith.constant 0 : i32
    %c0_i32_1 = arith.constant 0 : i32
    return %c0_i32, %c0_i32_0 : i32, i32
  }
  func.func @transform_3(%arg0: i32) -> (i32, i32) {
    %c0_i32 = arith.constant 0 : i32
    %c0_i32_0 = arith.constant 0 : i32
    %c0_i32_1 = arith.constant 0 : i32
    return %c0_i32, %c0_i32_0 : i32, i32
  }
  func.func @transform_4(%arg0: i32) -> (i32, i32) {
    %c0_i32 = arith.constant 0 : i32
    %c0_i32_0 = arith.constant 0 : i32
    %c0_i32_1 = arith.constant 0 : i32
    return %c0_i32, %c0_i32_0 : i32, i32
  }
  func.func @transform_5(%arg0: i32) -> (i32, i32) {
    %c0_i32 = arith.constant 0 : i32
    %c0_i32_0 = arith.constant 0 : i32
    return %arg0, %c0_i32 : i32, i32
  }
}

</mosaic_0001>

<llo_original>
// kernel: mlp_forward.1
$region0: #{mlp_forward.1}
  #allocation0 [shape = 'u32[]', space=smem, size = 0x4, offset = 0x4, fixed_abs, tag = 'smem constant byte address 0x4 - core index']
  #allocation1 [shape = 'u32[144,128]{1,0:T(1,128)}', space=vmem, size = 0x12000, scoped, tag = 'internal scratch']
  %s0 = inlined_call_operand.vmem [shape: bf16[16,128], index: 0, kind: input, shape index: {}]
  %s1 = inlined_call_operand.hbm [shape: bf16[128,128], index: 1, kind: input, shape index: {}]
  %s2 = inlined_call_operand.vmem [shape: f32[1,128], index: 2, kind: input, shape index: {}]
  %s3 = inlined_call_operand.hbm [shape: bf16[128,128], index: 3, kind: input, shape index: {}]
  %s4 = inlined_call_operand.vmem [shape: f32[1,128], index: 4, kind: input, shape index: {}]
  %s5 = inlined_call_operand.vmem [shape: f32[16,128], index: 5, kind: output, shape index: {}]
  %s6 = sld [smem:[#allocation0]]
  $region38: #{mlp_forward.1} parent=0
    _
  %s8 = ssub.s32 1, %s6
  %s9 = scalar_select 0, %s8, %s6
  $region1: #{mlp_forward.1} parent=0
    #allocation2 [shape = 'u8[32768]{0}', space=vmem, size = 0x8000, scoped, tag = 'input window, operand 1, single buffered']
    #allocation3 [shape = 's32[1]{0}', space=sflag, size = 0x4, scoped, tag = 'scoped memory for mlp_forward.1']
    #allocation4 [shape = 'u8[32768]{0}', space=vmem, size = 0x8000, scoped, tag = 'input window, operand 3, single buffered']
    #allocation5 [shape = 's32[1]{0}', space=sflag, size = 0x4, scoped, tag = 'scoped memory for mlp_forward.1']
    %10 = vsyncpa [#allocation3], 0
    %11 = vsyncpa [#allocation5], 0
    // Predicated region
    $region2: #{mlp_forward.1} parent=1 // pred_check
      _
    $region3: #{mlp_forward.1} parent=1 // pred_check_branch
      %13 = sbr.rel (0) target = $region5
    $region4: #{mlp_forward.1} parent=1 // pred_region
      _
    $region5: #{mlp_forward.1} parent=1 // pred_fallthru
      _
    // Predicated region
    $region6: #{mlp_forward.1} parent=1 // pred_check
      _
    $region7: #{mlp_forward.1} parent=1 // pred_check_branch
      %15 = sbr.rel (0) target = $region9
    $region8: #{mlp_forward.1} parent=1 // pred_region
      %s17 = ssub.s32 1024, 1024
      %18 = vsyncadd [#allocation3], %s17
      %s19 = sshll.u32 [#allocation2], 4
      %s20 = int_to_ptr.vmem [resolvable:$true] %s19
      %25 = dma.hbm_to_vmem [thread:$0]  %s1, 1024, %s20, [#allocation3], 64, 64, 4
    $region9: #{mlp_forward.1} parent=1 // pred_fallthru
      _
    // Predicated region
    $region10: #{mlp_forward.1} parent=1 // pred_check
      _
    $region11: #{mlp_forward.1} parent=1 // pred_check_branch
      %27 = sbr.rel (0) target = $region13
    $region12: #{mlp_forward.1} parent=1 // pred_region
      _
    $region13: #{mlp_forward.1} parent=1 // pred_fallthru
      _
    // Predicated region
    $region14: #{mlp_forward.1} parent=1 // pred_check
      _
    $region15: #{mlp_forward.1} parent=1 // pred_check_branch
      %29 = sbr.rel (0) target = $region17
    $region16: #{mlp_forward.1} parent=1 // pred_region
      %s31 = ssub.s32 1024, 1024
      %32 = vsyncadd [#allocation5], %s31
      %s33 = sshll.u32 [#allocation4], 4
      %s34 = int_to_ptr.vmem [resolvable:$true] %s33
      %39 = dma.hbm_to_vmem [thread:$0]  %s3, 1024, %s34, [#allocation5], 64, 64, 4
    $region17: #{mlp_forward.1} parent=1 // pred_fallthru
      _
    // Predicated region
    $region18: #{mlp_forward.1} parent=1 // pred_check
      _
    $region19: #{mlp_forward.1} parent=1 // pred_check_branch
      %41 = sbr.rel (0) target = $region21
    $region20: #{mlp_forward.1} parent=1 // pred_region
      _
    $region21: #{mlp_forward.1} parent=1 // pred_fallthru
      _
    // Predicated region
    $region22: #{mlp_forward.1} parent=1 // pred_check
      _
    $region23: #{mlp_forward.1} parent=1 // pred_check_branch
      %43 = sbr.rel (0) target = $region25
    $region24: #{mlp_forward.1} parent=1 // pred_region
      %44 = dma.done [#allocation3], 1024
    $region25: #{mlp_forward.1} parent=1 // pred_fallthru
      _
    // Predicated region
    $region26: #{mlp_forward.1} parent=1 // pred_check
      _
    $region27: #{mlp_forward.1} parent=1 // pred_check_branch
      %46 = sbr.rel (0) target = $region29
    $region28: #{mlp_forward.1} parent=1 // pred_region
      %47 = dma.done [#allocation5], 1024
    $region29: #{mlp_forward.1} parent=1 // pred_fallthru
      _
    %v49 = vld [vmem:[%s0] sm:$0xf]
    %v50 = vld [vmem:[%s0 + $0x4] sm:$0xf]
    %v51 = vld [vmem:[#allocation2] sm:$0xf]
    %v52 = vld [vmem:[#allocation2 + $0x4] sm:$0xf]
    %v53 = vld [vmem:[#allocation2 + $0x8] sm:$0xf]
    %v54 = vld [vmem:[#allocation2 + $0xc] sm:$0xf]
    %v55 = vld [vmem:[#allocation2 + $0x10] sm:$0xf]
    %v56 = vld [vmem:[#allocation2 + $0x14] sm:$0xf]
    %v57 = vld [vmem:[#allocation2 + $0x18] sm:$0xf]
    %v58 = vld [vmem:[#allocation2 + $0x1c] sm:$0xf]
    %v59 = vld [vmem:[#allocation2 + $0x20] sm:$0xf]
    %v60 = vld [vmem:[#allocation2 + $0x24] sm:$0xf]
    %v61 = vld [vmem:[#allocation2 + $0x28] sm:$0xf]
    %v62 = vld [vmem:[#allocation2 + $0x2c] sm:$0xf]
    %v63 = vld [vmem:[#allocation2 + $0x30] sm:$0xf]
    %v64 = vld [vmem:[#allocation2 + $0x34] sm:$0xf]
    %v65 = vld [vmem:[#allocation2 + $0x38] sm:$0xf]
    %v66 = vld [vmem:[#allocation2 + $0x3c] sm:$0xf]
    %v67 = vld [vmem:[%s2] sm:$0x1]
    %v69 = vlaneseq
    %v70 = vshrl.u32 %v69, 7
    %v71 = vsub.s32 0, %v70
    %v72 = vrot.slane %v67, %v71
    %v76 = vunpack.c.l.b16 %v49
    %v77 = vunpack.c.l.b16 %v50
    %v78 = vpack.c.b16 %v77, %v76
    %v96 = vunpack.c.l.b16 %v51
    %v97 = vunpack.c.l.b16 %v52
    %v98 = vunpack.c.l.b16 %v53
    %v99 = vunpack.c.l.b16 %v54
    %v100 = vunpack.c.l.b16 %v55
    %v101 = vunpack.c.l.b16 %v56
    %v102 = vunpack.c.l.b16 %v57
    %v103 = vunpack.c.l.b16 %v58
    %v104 = vunpack.c.l.b16 %v59
    %v105 = vunpack.c.l.b16 %v60
    %v106 = vunpack.c.l.b16 %v61
    %v107 = vunpack.c.l.b16 %v62
    %v108 = vunpack.c.l.b16 %v63
    %v109 = vunpack.c.l.b16 %v64
    %v110 = vunpack.c.l.b16 %v65
    %v111 = vunpack.c.l.b16 %v66
    %v112 = vpack.c.b16 %v97, %v96
    %v113 = vpack.c.b16 %v99, %v98
    %v114 = vpack.c.b16 %v101, %v100
    %v115 = vpack.c.b16 %v103, %v102
    %v116 = vpack.c.b16 %v105, %v104
    %v117 = vpack.c.b16 %v107, %v106
    %v118 = vpack.c.b16 %v109, %v108
    %v119 = vpack.c.b16 %v111, %v110
    %128 = vmatprep.subr.bf16.mxu0 0
    %129 = vmatpush1.bf16.msra.mxu0 %v112
    %130 = vmatprep.subr.bf16.mxu0 0
    %131 = vmatpush1.bf16.msra.mxu0 %v113
    %132 = vmatprep.subr.bf16.mxu0 0
    %133 = vmatpush1.bf16.msra.mxu0 %v114
    %134 = vmatprep.subr.bf16.mxu0 0
    %135 = vmatpush1.bf16.msra.mxu0 %v115
    %136 = vmatprep.subr.bf16.mxu0 0
    %137 = vmatpush1.bf16.msra.mxu0 %v116
    %138 = vmatprep.subr.bf16.mxu0 0
    %139 = vmatpush1.bf16.msra.mxu0 %v117
    %140 = vmatprep.subr.bf16.mxu0 0
    %141 = vmatpush1.bf16.msra.mxu0 %v118
    %142 = vmatprep.subr.bf16.mxu0 0
    %143 = vmatpush1.bf16.msra.mxu0 %v119
    %144 = vmatprep.subr.bf16.mxu0 0
    %145 = vmatpush1.bf16.msra.mxu0 0
    %146 = vmatprep.subr.bf16.mxu0 0
    %147 = vmatpush1.bf16.msra.mxu0 0
    %148 = vmatprep.subr.bf16.mxu0 0
    %149 = vmatpush1.bf16.msra.mxu0 0
    %150 = vmatprep.subr.bf16.mxu0 0
    %151 = vmatpush1.bf16.msra.mxu0 0
    %152 = vmatprep.subr.bf16.mxu0 0
    %153 = vmatpush1.bf16.msra.mxu0 0
    %154 = vmatprep.subr.bf16.mxu0 0
    %155 = vmatpush1.bf16.msra.mxu0 0
    %156 = vmatprep.subr.bf16.mxu0 0
    %157 = vmatpush1.bf16.msra.mxu0 0
    %158 = vmatprep.subr.bf16.mxu0 0
    %159 = vmatpush1.bf16.msra.mxu0 0
    %160 = vmatprep.mubr.bf16.mxu0 0
    %161 = vmatmul.mubr.bf16.gmra.mrb[0].mxu0 %v78
    %v162 = vpop.f32.mrb[0].mxu0
    %v163 = vadd.f32 %v72, %v162
    %v164 = vpop.f32.mrb[0].mxu0
    %v165 = vpop.f32.mrb[0].mxu0
    %v166 = vadd.f32 %v72, %v165
    %v167 = vpop.f32.mrb[0].mxu0
    %168 = vdwg.mxu0
    %v169 = vmul.f32 %v163, 0.5
    %v170 = vmul.f32 %v166, 0.5
    %v171 = vmul.f32 %v163, 0.70710677
    %v172 = vmul.f32 %v166, 0.70710677
    %v173 = verf.f32.pop %v171
    %v174 = verf.f32.pop %v172
    %v175 = vadd.f32 %v173, 1.0
    %v176 = vadd.f32 %v174, 1.0
    %v177 = vmul.f32 %v169, %v175
    %v178 = vmul.f32 %v170, %v176
    %v179 = vpack.c.bf16 %v178, %v177
    %v180 = vld [vmem:[#allocation4] sm:$0xf]
    %v181 = vld [vmem:[#allocation4 + $0x4] sm:$0xf]
    %v182 = vld [vmem:[#allocation4 + $0x8] sm:$0xf]
    %v183 = vld [vmem:[#allocation4 + $0xc] sm:$0xf]
    %v184 = vld [vmem:[#allocation4 + $0x10] sm:$0xf]
    %v185 = vld [vmem:[#allocation4 + $0x14] sm:$0xf]
    %v186 = vld [vmem:[#allocation4 + $0x18] sm:$0xf]
    %v187 = vld [vmem:[#allocation4 + $0x1c] sm:$0xf]
    %v188 = vld [vmem:[#allocation4 + $0x20] sm:$0xf]
    %v189 = vld [vmem:[#allocation4 + $0x24] sm:$0xf]
    %v190 = vld [vmem:[#allocation4 + $0x28] sm:$0xf]
    %v191 = vld [vmem:[#allocation4 + $0x2c] sm:$0xf]
    %v192 = vld [vmem:[#allocation4 + $0x30] sm:$0xf]
    %v193 = vld [vmem:[#allocation4 + $0x34] sm:$0xf]
    %v194 = vld [vmem:[#allocation4 + $0x38] sm:$0xf]
    %v195 = vld [vmem:[#allocation4 + $0x3c] sm:$0xf]
    %v196 = vld [vmem:[%s4] sm:$0x1]
    %v198 = vlaneseq
    %v199 = vshrl.u32 %v198, 7
    %v200 = vsub.s32 0, %v199
    %v201 = vrot.slane %v196, %v200
    %v219 = vunpack.c.l.b16 %v180
    %v220 = vunpack.c.l.b16 %v181
    %v221 = vunpack.c.l.b16 %v182
    %v222 = vunpack.c.l.b16 %v183
    %v223 = vunpack.c.l.b16 %v184
    %v224 = vunpack.c.l.b16 %v185
    %v225 = vunpack.c.l.b16 %v186
    %v226 = vunpack.c.l.b16 %v187
    %v227 = vunpack.c.l.b16 %v188
    %v228 = vunpack.c.l.b16 %v189
    %v229 = vunpack.c.l.b16 %v190
    %v230 = vunpack.c.l.b16 %v191
    %v231 = vunpack.c.l.b16 %v192
    %v232 = vunpack.c.l.b16 %v193
    %v233 = vunpack.c.l.b16 %v194
    %v234 = vunpack.c.l.b16 %v195
    %v235 = vpack.c.b16 %v220, %v219
    %v236 = vpack.c.b16 %v222, %v221
    %v237 = vpack.c.b16 %v224, %v223
    %v238 = vpack.c.b16 %v226, %v225
    %v239 = vpack.c.b16 %v228, %v227
    %v240 = vpack.c.b16 %v230, %v229
    %v241 = vpack.c.b16 %v232, %v231
    %v242 = vpack.c.b16 %v234, %v233
    %251 = vmatprep.subr.bf16.mxu0 0
    %252 = vmatpush1.bf16.msra.mxu0 %v235
    %253 = vmatprep.subr.bf16.mxu0 0
    %254 = vmatpush1.bf16.msra.mxu0 %v236
    %255 = vmatprep.subr.bf16.mxu0 0
    %256 = vmatpush1.bf16.msra.mxu0 %v237
    %257 = vmatprep.subr.bf16.mxu0 0
    %258 = vmatpush1.bf16.msra.mxu0 %v238
    %259 = vmatprep.subr.bf16.mxu0 0
    %260 = vmatpush1.bf16.msra.mxu0 %v239
    %261 = vmatprep.subr.bf16.mxu0 0
    %262 = vmatpush1.bf16.msra.mxu0 %v240
    %263 = vmatprep.subr.bf16.mxu0 0
    %264 = vmatpush1.bf16.msra.mxu0 %v241
    %265 = vmatprep.subr.bf16.mxu0 0
    %266 = vmatpush1.bf16.msra.mxu0 %v242
    %267 = vmatprep.subr.bf16.mxu0 0
    %268 = vmatpush1.bf16.msra.mxu0 0
    %269 = vmatprep.subr.bf16.mxu0 0
    %270 = vmatpush1.bf16.msra.mxu0 0
    %271 = vmatprep.subr.bf16.mxu0 0
    %272 = vmatpush1.bf16.msra.mxu0 0
    %273 = vmatprep.subr.bf16.mxu0 0
    %274 = vmatpush1.bf16.msra.mxu0 0
    %275 = vmatprep.subr.bf16.mxu0 0
    %276 = vmatpush1.bf16.msra.mxu0 0
    %277 = vmatprep.subr.bf16.mxu0 0
    %278 = vmatpush1.bf16.msra.mxu0 0
    %279 = vmatprep.subr.bf16.mxu0 0
    %280 = vmatpush1.bf16.msra.mxu0 0
    %281 = vmatprep.subr.bf16.mxu0 0
    %282 = vmatpush1.bf16.msra.mxu0 0
    %283 = vmatprep.mubr.bf16.mxu0 0
    %284 = vmatmul.mubr.bf16.gmra.mrb[0].mxu0 %v179
    %v285 = vpop.f32.mrb[0].mxu0
    %v286 = vadd.f32 %v201, %v285
    %v287 = vpop.f32.mrb[0].mxu0
    %v288 = vpop.f32.mrb[0].mxu0
    %v289 = vadd.f32 %v201, %v288
    %v290 = vpop.f32.mrb[0].mxu0
    %291 = vdwg.mxu0
    %292 = vst [vmem:[%s5] sm:$0xff] %v286
    %293 = vst [vmem:[%s5 + $0x8] sm:$0xff] %v289
    // Predicated region
    $region30: #{mlp_forward.1} parent=1 // pred_check
      _
    $region31: #{mlp_forward.1} parent=1 // pred_check_branch
      %295 = sbr.rel (0) target = $region33
    $region32: #{mlp_forward.1} parent=1 // pred_region
      _
    $region33: #{mlp_forward.1} parent=1 // pred_fallthru
      _
    // Predicated region
    $region34: #{mlp_forward.1} parent=1 // pred_check
      _
    $region35: #{mlp_forward.1} parent=1 // pred_check_branch
      %297 = sbr.rel (0) target = $region37
    $region36: #{mlp_forward.1} parent=1 // pred_region
      _
    $region37: #{mlp_forward.1} parent=1 // pred_fallthru
      _
    %298 = vsyncpa [#allocation3], 1
    %299 = vsyncpa [#allocation5], 1

</llo_original>
